<compile_context>
chip_gen: v7x
topology: tpu7x:2x2x1
jax: 0.10.0
libtpu: 0.0.40
codegen_flags: <defaults>
</compile_context>

<pallas_src>
import jax
import jax.numpy as jnp
from jax.experimental import pallas as pl
from jax.experimental.pallas import tpu as pltpu

_LANE = 128
_SUBLANE = 8


def _round_up(v, m):
    return ((v + m - 1) // m) * m


def _vmem_capacity_bytes():
    try:
        return int(pltpu.get_tpu_info().vmem_capacity_bytes)
    except Exception:
        return 64 * 1024 * 1024  # conservative (v7x per-TC) fallback


def _choose_tk(H, Lp, itemsize, budget):
    """Pick the reduction tile so the double-buffered weight block fits ~budget/3."""
    w_budget = max(budget // 3, 2 * _LANE * Lp * itemsize)
    max_tk = max(_LANE, (w_budget // (2 * Lp * itemsize)) // _LANE * _LANE)
    if H <= max_tk:
        return H, H                       # whole reduction in one step, no padding
    # Prefer a 128-multiple that divides H exactly -> no K-padding copy of x.
    tk = max_tk
    while tk >= _LANE:
        if H % tk == 0:
            return tk, H
        tk -= _LANE
    # Rare fall-back (huge, non-128-multiple H): zero-pad the reduction dim.
    tk = max_tk
    return tk, _round_up(H, tk)


def _pointer_kernel(x_ref, w_ref, b_ref, o_ref, acc_ref):
    # x_ref: (tm, tk)  w_ref: (tk, Lp)  b_ref: (1, L)  o_ref: (tm, L)
    # acc_ref: (tm, Lp) f32 scratch, resident across the K grid axis.
    k = pl.program_id(1)

    @pl.when(k == 0)
    def _():
        acc_ref[...] = jnp.zeros_like(acc_ref)

    acc_ref[...] += jnp.dot(x_ref[...], w_ref[...],
                            preferred_element_type=jnp.float32)

    @pl.when(k == pl.num_programs(1) - 1)
    def _():
        L = o_ref.shape[-1]
        o_ref[...] = (acc_ref[:, :L]
                      + b_ref[...].astype(jnp.float32)).astype(o_ref.dtype)


def pointer_forward(x, weight, bias, *, max_tile_m=8192):
    """Pointer forward (eval): Dense(Dropout(x)) with dropout = identity.

    x: [B, S, H]; weight: [H, L] (transpose of torch nn.Linear .weight);
    bias: [L].  Returns [B, S, L].
    """
    B, S, H = x.shape
    L = weight.shape[1]
    M = B * S
    dt = x.dtype
    itemsize = jnp.dtype(dt).itemsize

    # MXU-regular N width; lives only in VMEM (weight / accumulator), never in HBM.
    Lp = _round_up(L, _LANE)

    capacity = _vmem_capacity_bytes()
    budget = min((capacity * 3) // 5, 96 * 1024 * 1024)   # ~60% of this generation's VMEM

    tk, Kp = _choose_tk(H, Lp, itemsize, budget)
    n_k = Kp // tk

    # Bytes that do not scale with tm: weight + bias (double buffered).
    fixed = 2 * tk * Lp * itemsize + 2 * _SUBLANE * Lp * itemsize
    # Per-output-row bytes: x + out double buffers (VMEM lane-padded) + f32 acc.
    per_row = 2 * tk * itemsize + 2 * Lp * itemsize + 4 * Lp

    tm = (max(budget - fixed, per_row * _LANE) // per_row) // _LANE * _LANE
    tm = max(_LANE, min(tm, max_tile_m))
    if M >= 2 * _LANE:
        # Keep >= 2 row tiles so the "parallel" M axis can shard across both
        # v7x TensorCores; boundary block (if M % tm != 0) is masked by Pallas.
        tm = min(tm, _round_up(-(-M // 2), _LANE))
        grid_m = -(-M // tm)
    else:
        tm = M                              # single full-extent block (layout-legal)
        grid_m = 1

    x2d = x.reshape(M, H)
    if Kp != H:
        # TODO(synk): only triggers for very large, non-128-multiple hidden sizes.
        x2d = jnp.pad(x2d, ((0, 0), (0, Kp - H)))
    w_p = weight
    if Lp != L or Kp != H:
        w_p = jnp.pad(weight, ((0, Kp - H), (0, Lp - L)))
    b2d = bias.reshape(1, L)

    # Actual VMEM footprint (+ headroom) drives the compiler limit.
    footprint = (2 * tm * tk * itemsize        # x double buffer
                 + 2 * tk * Lp * itemsize      # weight double buffer
                 + 2 * tm * Lp * itemsize      # out double buffer (lane-padded in VMEM)
                 + tm * Lp * 4                 # f32 accumulator scratch
                 + 2 * _SUBLANE * Lp * itemsize)
    vmem_limit = int(min(capacity, footprint + footprint // 2 + (4 << 20)))

    cost = pl.CostEstimate(
        flops=2 * M * H * L,
        transcendentals=0,
        bytes_accessed=(M * H + H * L + L + M * L) * itemsize,
    )

    out2d = pl.pallas_call(
        _pointer_kernel,
        out_shape=jax.ShapeDtypeStruct((M, L), dt),
        grid_spec=pltpu.PrefetchScalarGridSpec(
            num_scalar_prefetch=0,
            grid=(grid_m, n_k),
            in_specs=[
                pl.BlockSpec((tm, tk), lambda i, k: (i, k)),   # streamed x tiles
                pl.BlockSpec((tk, Lp), lambda i, k: (k, 0)),   # weight K-slabs
                pl.BlockSpec((1, L), lambda i, k: (0, 0)),     # resident bias
            ],
            out_specs=pl.BlockSpec((tm, L), lambda i, k: (i, 0)),
            scratch_shapes=[pltpu.VMEM((tm, Lp), jnp.float32)],
        ),
        compiler_params=pltpu.CompilerParams(
            dimension_semantics=("parallel", "arbitrary"),
            vmem_limit_bytes=vmem_limit,
        ),
        cost_estimate=cost,
    )(x2d, w_p, b2d)

    return out2d.reshape(B, S, L)


if __name__ == "__main__":
    # Config: hidden_size=32, num_labels=1 (Pointer default), batch=2, seq=8
    B, S, H, L = 2, 8, 32, 1

    key = jax.random.PRNGKey(0)
    kx, kw, kb = jax.random.split(key, 3)

    x = jax.random.normal(kx, (B, S, H), dtype=jnp.float32)
    # Deterministic synthetic parameters (PyTorch-like uniform init scale).
    bound = 1.0 / (H ** 0.5)
    weight = jax.random.uniform(kw, (H, L), minval=-bound, maxval=bound,
                                dtype=jnp.float32)
    bias = jax.random.uniform(kb, (L,), minval=-bound, maxval=bound,
                              dtype=jnp.float32)

    out = pointer_forward(x, weight, bias)
    out = jax.block_until_ready(out)

    # Reference check in plain JAX (dropout = identity in eval mode).
    ref = x @ weight + bias
    assert out.shape == (B, S, L)
    assert jnp.allclose(out, ref, atol=1e-5, rtol=1e-5)

    print("KERNEL_OK")
</pallas_src>

<mosaic_0001>
module attributes {stable_mosaic.version = 11 : i64} {
  func.func @_pointer_kernel(%arg0: i32, %arg1: i32, %arg2: memref<16x32xf32, #tpu.memory_space<vmem>>, %arg3: memref<32x128xf32, #tpu.memory_space<vmem>>, %arg4: memref<1x1xf32, #tpu.memory_space<vmem>>, %arg5: memref<16x1xf32, #tpu.memory_space<vmem>>, %arg6: memref<16x128xf32, #tpu.memory_space<vmem>>) attributes {dimension_semantics = [#tpu.dimension_semantics<parallel>, #tpu.dimension_semantics<arbitrary>], iteration_bounds = array<i64: 1, 1>, scalar_prefetch = 0 : i64, scratch_operands = 1 : i64, tpu.core_type = #tpu.core_type<tc>, window_params = [{transform_indices = @transform_0, window_bounds = array<i64: 16, 32>}, {transform_indices = @transform_1, window_bounds = array<i64: 32, 128>}, {pipeline_mode = #tpu.pipeline_mode<synchronous>, transform_indices = @transform_2, window_bounds = array<i64: 1, 1>}, {transform_indices = @transform_3, window_bounds = array<i64: 16, 1>}]} {
    %c0_i32 = arith.constant 0 : i32
    %0 = arith.cmpi eq, %arg1, %c0_i32 : i32
    %1 = arith.extui %0 : i1 to i32
    %c0_i32_0 = arith.constant 0 : i32
    %2 = arith.cmpi ne, %1, %c0_i32_0 : i32
    scf.if %2 {
      %cst_10 = arith.constant 0.000000e+00 : f32
      %12 = vector.broadcast %cst_10 : f32 to vector<16x128xf32>
      %c0_11 = arith.constant 0 : index
      %c0_12 = arith.constant 0 : index
      %13 = vector.load %arg6[%c0_11, %c0_12] : memref<16x128xf32, #tpu.memory_space<vmem>>, vector<16x128xf32>
      tpu.vector_store %arg6[%c0_11, %c0_12], %12 {strides = array<i32>} : memref<16x128xf32, #tpu.memory_space<vmem>>, vector<16x128xf32>,
    } else {
    }
    %c0 = arith.constant 0 : index
    %c0_1 = arith.constant 0 : index
    %3 = vector.load %arg6[%c0, %c0_1] : memref<16x128xf32, #tpu.memory_space<vmem>>, vector<16x128xf32>
    %c0_2 = arith.constant 0 : index
    %c0_3 = arith.constant 0 : index
    %4 = vector.load %arg2[%c0_2, %c0_3] : memref<16x32xf32, #tpu.memory_space<vmem>>, vector<16x32xf32>
    %c0_4 = arith.constant 0 : index
    %c0_5 = arith.constant 0 : index
    %5 = vector.load %arg3[%c0_4, %c0_5] : memref<32x128xf32, #tpu.memory_space<vmem>>, vector<32x128xf32>
    %cst = arith.constant dense<0.000000e+00> : vector<16x128xf32>
    %6 = tpu.matmul %4, %5, %cst {dimension_numbers = #tpu.dot_dimension_numbers<[1], [0], [0], [1], [0, 0, 1, 1], [], []>} : vector<16x32xf32>, vector<32x128xf32>, vector<16x128xf32> -> vector<16x128xf32>
    %7 = arith.addf %3, %6 : vector<16x128xf32>
    %c0_6 = arith.constant 0 : index
    %c0_7 = arith.constant 0 : index
    %8 = vector.load %arg6[%c0_6, %c0_7] : memref<16x128xf32, #tpu.memory_space<vmem>>, vector<16x128xf32>
    tpu.vector_store %arg6[%c0_6, %c0_7], %7 {strides = array<i32>} : memref<16x128xf32, #tpu.memory_space<vmem>>, vector<16x128xf32>,
    %c0_i32_8 = arith.constant 0 : i32
    %9 = arith.cmpi eq, %arg1, %c0_i32_8 : i32
    %10 = arith.extui %9 : i1 to i32
    %c0_i32_9 = arith.constant 0 : i32
    %11 = arith.cmpi ne, %10, %c0_i32_9 : i32
    scf.if %11 {
      %c0_10 = arith.constant 0 : index
      %c0_11 = arith.constant 0 : index
      %12 = vector.load %arg6[%c0_10, %c0_11] : memref<16x128xf32, #tpu.memory_space<vmem>>, vector<16x1xf32>
      %c0_12 = arith.constant 0 : index
      %c0_13 = arith.constant 0 : index
      %13 = vector.load %arg4[%c0_12, %c0_13] : memref<1x1xf32, #tpu.memory_space<vmem>>, vector<1x1xf32>
      %14 = vector.broadcast %13 : vector<1x1xf32> to vector<16x1xf32>
      %15 = arith.addf %12, %14 : vector<16x1xf32>
      %c0_14 = arith.constant 0 : index
      %c0_15 = arith.constant 0 : index
      %16 = vector.load %arg5[%c0_14, %c0_15] : memref<16x1xf32, #tpu.memory_space<vmem>>, vector<16x1xf32>
      tpu.vector_store %arg5[%c0_14, %c0_15], %15 {strides = array<i32>} : memref<16x1xf32, #tpu.memory_space<vmem>>, vector<16x1xf32>,
    } else {
    }
    return
  }
  func.func @transform_0(%arg0: i32, %arg1: i32) -> (i32, i32) {
    %c0_i32 = arith.constant 0 : i32
    return %arg0, %arg1 : i32, i32
  }
  func.func @transform_1(%arg0: i32, %arg1: i32) -> (i32, i32) {
    %c0_i32 = arith.constant 0 : i32
    %c0_i32_0 = arith.constant 0 : i32
    return %arg1, %c0_i32 : i32, i32
  }
  func.func @transform_2(%arg0: i32, %arg1: i32) -> (i32, i32) {
    %c0_i32 = arith.constant 0 : i32
    %c0_i32_0 = arith.constant 0 : i32
    %c0_i32_1 = arith.constant 0 : i32
    return %c0_i32, %c0_i32_0 : i32, i32
  }
  func.func @transform_3(%arg0: i32, %arg1: i32) -> (i32, i32) {
    %c0_i32 = arith.constant 0 : i32
    %c0_i32_0 = arith.constant 0 : i32
    return %arg0, %c0_i32 : i32, i32
  }
}

</mosaic_0001>

<llo_original>
// kernel: tpu_custom_call.1
$region0: #{tpu_custom_call.1}
  #allocation0 [shape = 'u32[]', space=smem, size = 0x4, offset = 0x4, fixed_abs, tag = 'smem constant byte address 0x4 - core index']
  #allocation1 [shape = 'u32[144,128]{1,0:T(1,128)}', space=vmem, size = 0x12000, scoped, tag = 'internal scratch']
  #allocation2 [shape = 'f32[16,128]{1,0:T(8,128)}', space=vmem, size = 0x2000, scoped, tag = 'scratch operand']
  #allocation3 [shape = 'f32[1,1]{1,0:T(1,128)S(1)}', space=vmem, size = 0x200, scoped, tag = 'scoped memory for tpu_custom_call.1']
  %s0 = inlined_call_operand.hbm [shape: f32[16,32], index: 0, kind: input, shape index: {}]
  %s1 = inlined_call_operand.hbm [shape: f32[32,128], index: 1, kind: input, shape index: {}]
  %s2 = inlined_call_operand.<no memory space> [shape: f32[1,1], index: 2, kind: input, shape index: {}]
  %s3 = inlined_call_operand.vmem [shape: f32[16,1], index: 3, kind: output, shape index: {}]
  %s4 = sld [smem:[#allocation0]]
  $region38: #{tpu_custom_call.1} parent=0
    _
  %s6 = ssub.s32 1, %s4
  %s7 = scalar_select 0, %s6, %s4
  %v8 = vstv %s2
  %9 = vst [vmem:[#allocation3] sm:$0x1] %v8
  $region1: #{tpu_custom_call.1} parent=0
    #allocation4 [shape = 'u8[8192]{0}', space=vmem, size = 0x2000, scoped, tag = 'input window, operand 0, single buffered']
    #allocation5 [shape = 's32[1]{0}', space=sflag, size = 0x4, scoped, tag = 'scoped memory for tpu_custom_call.1']
    #allocation6 [shape = 'u8[16384]{0}', space=vmem, size = 0x4000, scoped, tag = 'input window, operand 1, single buffered']
    #allocation7 [shape = 's32[1]{0}', space=sflag, size = 0x4, scoped, tag = 'scoped memory for tpu_custom_call.1']
    %10 = vsyncpa [#allocation5], 0
    %11 = vsyncpa [#allocation7], 0
    // Predicated region
    $region2: #{tpu_custom_call.1} parent=1 // pred_check
      _
    $region3: #{tpu_custom_call.1} parent=1 // pred_check_branch
      %13 = sbr.rel (0) target = $region5
    $region4: #{tpu_custom_call.1} parent=1 // pred_region
      %s15 = ssub.s32 256, 256
      %16 = vsyncadd [#allocation5], %s15
      %s17 = sshll.u32 [#allocation4], 4
      %s18 = int_to_ptr.vmem [resolvable:$true] %s17
      %23 = dma.hbm_to_vmem [thread:$0]  %s0, 256, %s18, [#allocation5], 128, 128, 8
    $region5: #{tpu_custom_call.1} parent=1 // pred_fallthru
      _
    // Predicated region
    $region6: #{tpu_custom_call.1} parent=1 // pred_check
      _
    $region7: #{tpu_custom_call.1} parent=1 // pred_check_branch
      %25 = sbr.rel (0) target = $region9
    $region8: #{tpu_custom_call.1} parent=1 // pred_region
      %s27 = ssub.s32 512, 512
      %28 = vsyncadd [#allocation7], %s27
      %s29 = sshll.u32 [#allocation6], 4
      %s30 = int_to_ptr.vmem [resolvable:$true] %s29
      %35 = dma.hbm_to_vmem [thread:$0]  %s1, 512, %s30, [#allocation7], 128, 128, 8
    $region9: #{tpu_custom_call.1} parent=1 // pred_fallthru
      _
    // Predicated region
    $region10: #{tpu_custom_call.1} parent=1 // pred_check
      _
    $region11: #{tpu_custom_call.1} parent=1 // pred_check_branch
      %37 = sbr.rel (0) target = $region13
    $region12: #{tpu_custom_call.1} parent=1 // pred_region
      _
    $region13: #{tpu_custom_call.1} parent=1 // pred_fallthru
      _
    // Predicated region
    $region14: #{tpu_custom_call.1} parent=1 // pred_check
      _
    $region15: #{tpu_custom_call.1} parent=1 // pred_check_branch
      %39 = sbr.rel (0) target = $region17
    $region16: #{tpu_custom_call.1} parent=1 // pred_region
      %40 = dma.done [#allocation5], 256
    $region17: #{tpu_custom_call.1} parent=1 // pred_fallthru
      _
    // Predicated region
    $region18: #{tpu_custom_call.1} parent=1 // pred_check
      _
    $region19: #{tpu_custom_call.1} parent=1 // pred_check_branch
      %42 = sbr.rel (0) target = $region21
    $region20: #{tpu_custom_call.1} parent=1 // pred_region
      %43 = dma.done [#allocation7], 512
    $region21: #{tpu_custom_call.1} parent=1 // pred_fallthru
      _
    %p44 = scmp.eq.s32.totalorder 0, 0
    // Predicated region
    $region22: #{tpu_custom_call.1} parent=1 // pred_check
      %p45 = pneg %p44
    $region23: #{tpu_custom_call.1} parent=1 // pred_check_branch
      %47 = sbr.rel (%p45) target = $region25
    $region24: #{tpu_custom_call.1} parent=1 // pred_region
      %48 = vst [vmem:[#allocation2] sm:$0xff] 0.0
      %49 = vst [vmem:[#allocation2 + $0x8] sm:$0xff] 0.0
    $region25: #{tpu_custom_call.1} parent=1 // pred_fallthru
      _
    %v50 = vld [vmem:[#allocation2] sm:$0xff]
    %v51 = vld [vmem:[#allocation2 + $0x8] sm:$0xff]
    %v52 = vld [vmem:[#allocation4] sm:$0xff]
    %v53 = vld [vmem:[#allocation4 + $0x8] sm:$0xff]
    %v54 = vld [vmem:[#allocation6] sm:$0xff]
    %v55 = vld [vmem:[#allocation6 + $0x8] sm:$0xff]
    %v56 = vld [vmem:[#allocation6 + $0x10] sm:$0xff]
    %v57 = vld [vmem:[#allocation6 + $0x18] sm:$0xff]
    %vm58 = vcmask 261120
    %v60 = vsel %vm58, %v52, 0
    %v63 = vsel %vm58, %v53, 0
    %65 = vmatprep.subr.mxu0 0.0
    %66 = vmatpush1.msra.mxu0 %v54
    %67 = vmatprep.subr.mxu0 0.0
    %68 = vmatpush1.msra.mxu0 %v55
    %69 = vmatprep.subr.mxu0 0.0
    %70 = vmatpush1.msra.mxu0 %v56
    %71 = vmatprep.subr.mxu0 0.0
    %72 = vmatpush1.msra.mxu0 %v57
    %73 = vmatprep.subr.mxu0 0.0
    %74 = vmatpush1.msra.mxu0 0.0
    %75 = vmatprep.subr.mxu0 0.0
    %76 = vmatpush1.msra.mxu0 0.0
    %77 = vmatprep.subr.mxu0 0.0
    %78 = vmatpush1.msra.mxu0 0.0
    %79 = vmatprep.subr.mxu0 0.0
    %80 = vmatpush1.msra.mxu0 0.0
    %81 = vmatprep.subr.mxu0 0.0
    %82 = vmatpush1.msra.mxu0 0.0
    %83 = vmatprep.subr.mxu0 0.0
    %84 = vmatpush1.msra.mxu0 0.0
    %85 = vmatprep.subr.mxu0 0.0
    %86 = vmatpush1.msra.mxu0 0.0
    %87 = vmatprep.subr.mxu0 0.0
    %88 = vmatpush1.msra.mxu0 0.0
    %89 = vmatprep.subr.mxu0 0.0
    %90 = vmatpush1.msra.mxu0 0.0
    %91 = vmatprep.subr.mxu0 0.0
    %92 = vmatpush1.msra.mxu0 0.0
    %93 = vmatprep.subr.mxu0 0.0
    %94 = vmatpush1.msra.mxu0 0.0
    %95 = vmatprep.subr.mxu0 0.0
    %96 = vmatpush1.msra.mxu0 0.0
    %97 = vmatprep.subr.mxu0 0.0
    %98 = vmatpush1.msra.mxu0 0.0
    %99 = vmatprep.subr.mxu0 0.0
    %100 = vmatpush1.msra.mxu0 0.0
    %101 = vmatprep.subr.mxu0 0.0
    %102 = vmatpush1.msra.mxu0 0.0
    %103 = vmatprep.subr.mxu0 0.0
    %104 = vmatpush1.msra.mxu0 0.0
    %105 = vmatprep.subr.mxu0 0.0
    %106 = vmatpush1.msra.mxu0 0.0
    %107 = vmatprep.subr.mxu0 0.0
    %108 = vmatpush1.msra.mxu0 0.0
    %109 = vmatprep.subr.mxu0 0.0
    %110 = vmatpush1.msra.mxu0 0.0
    %111 = vmatprep.subr.mxu0 0.0
    %112 = vmatpush1.msra.mxu0 0.0
    %113 = vmatprep.subr.mxu0 0.0
    %114 = vmatpush1.msra.mxu0 0.0
    %115 = vmatprep.subr.mxu0 0.0
    %116 = vmatpush1.msra.mxu0 0.0
    %117 = vmatprep.subr.mxu0 0.0
    %118 = vmatpush1.msra.mxu0 0.0
    %119 = vmatprep.subr.mxu0 0.0
    %120 = vmatpush1.msra.mxu0 0.0
    %121 = vmatprep.subr.mxu0 0.0
    %122 = vmatpush1.msra.mxu0 0.0
    %123 = vmatprep.subr.mxu0 0.0
    %124 = vmatpush1.msra.mxu0 0.0
    %125 = vmatprep.subr.mxu0 0.0
    %126 = vmatpush1.msra.mxu0 0.0
    %127 = vmatprep.subr.mxu0 0.0
    %128 = vmatpush1.msra.mxu0 0.0
    %129 = vmatprep.mubr.f32.mxu0 0.0
    %130 = vmatmul.mubr.f32.gmra.mrb[0].mxu0 %v60
    %v131 = vpop.f32.mrb[0].mxu0
    %v132 = vadd.f32 0.0, %v131
    %v133 = vpop.f32.mrb[0].mxu0
    %134 = vmatprep.mubr.f32.mxu0 0.0
    %135 = vmatmul.mubr.f32.gmra.mrb[0].mxu0 %v63
    %v136 = vpop.f32.mrb[0].mxu0
    %v137 = vadd.f32 0.0, %v136
    %v138 = vpop.f32.mrb[0].mxu0
    %139 = vdwg.mxu0
    %v140 = vadd.f32 %v50, %v132
    %v141 = vadd.f32 %v51, %v137
    %142 = vst [vmem:[#allocation2] sm:$0xff] %v140
    %143 = vst [vmem:[#allocation2 + $0x8] sm:$0xff] %v141
    // Predicated region
    $region26: #{tpu_custom_call.1} parent=1 // pred_check
      %p144 = pneg %p44
    $region27: #{tpu_custom_call.1} parent=1 // pred_check_branch
      %146 = sbr.rel (%p144) target = $region29
    $region28: #{tpu_custom_call.1} parent=1 // pred_region
      %v147 = vld [vmem:[#allocation2] sm:$0xff]
      %v148 = vld [vmem:[#allocation2 + $0x8] sm:$0xff]
      %v149 = vld [vmem:[#allocation3] sm:$0x1]
      %v151 = vlaneseq
      %v152 = vshrl.u32 %v151, 7
      %v153 = vsub.s32 0, %v152
      %v154 = vrot.slane %v149, %v153
      %v156 = vadd.f32 %v147, %v154
      %v157 = vadd.f32 %v148, %v154
      %vm158 = vcmask 7168
      %159 = vst.msk [vmem:[%s3] sm:$0xff] %vm158, %v156
      %160 = vst.msk [vmem:[%s3 + $0x8] sm:$0xff] %vm158, %v157
    $region29: #{tpu_custom_call.1} parent=1 // pred_fallthru
      _
    // Predicated region
    $region30: #{tpu_custom_call.1} parent=1 // pred_check
      _
    $region31: #{tpu_custom_call.1} parent=1 // pred_check_branch
      %162 = sbr.rel (0) target = $region33
    $region32: #{tpu_custom_call.1} parent=1 // pred_region
      _
    $region33: #{tpu_custom_call.1} parent=1 // pred_fallthru
      _
    // Predicated region
    $region34: #{tpu_custom_call.1} parent=1 // pred_check
      _
    $region35: #{tpu_custom_call.1} parent=1 // pred_check_branch
      %164 = sbr.rel (0) target = $region37
    $region36: #{tpu_custom_call.1} parent=1 // pred_region
      _
    $region37: #{tpu_custom_call.1} parent=1 // pred_fallthru
      _
    %165 = vsyncpa [#allocation5], 1
    %166 = vsyncpa [#allocation7], 1

</llo_original>
